<compile_context>
chip_gen: v6e
topology: v6e:2x2x1
jax: 0.10.0
libtpu: 0.0.40
codegen_flags: <defaults>
</compile_context>

<pallas_src>
import functools
import math

import jax
import jax.numpy as jnp
from jax import lax
from jax.experimental import pallas as pl
from jax.experimental.pallas import tpu as pltpu

_LANE = 128
# Budget across the 4 pipelined VMEM buffers (2 input + 2 output, double
# buffered).  Stays under the 32 MiB scoped default on v6e/v7x and well clear
# of v7x's 64 MiB physical VMEM; v5e's 16 MiB default is raised explicitly.
_PIPELINE_VMEM_BUDGET = 24 << 20
# Target at most ~4 MiB per x block: long contiguous DMA rows, near-roofline.
_MAX_BLOCK_BYTES = 4 << 20
# Enough grid iterations to hide DMA prologue/epilogue and feed both v7x TCs.
_MIN_GRID_STEPS = 8


def _rmsnorm_kernel(x_ref, g_ref, o_ref, *, eps):
    # x_ref: (dim, nt) tile -- dim on sublanes, n-tile on lanes.
    # g_ref: (dim, 1)       -- already scaled by sqrt(dim).
    x = x_ref[...].astype(jnp.float32)                       # (dim, nt)

    # Channel L2 norm per position: reduce over the sublane (dim) axis.
    sum_sq = jnp.sum(x * x, axis=0, keepdims=True)            # (1, nt)

    # F.normalize clamp: x / max(||x||, eps) == x * rsqrt(max(||x||^2, eps^2))
    inv_norm = lax.rsqrt(jnp.maximum(sum_sq, eps * eps))       # EUP, not VALU div

    y = x * inv_norm * g_ref[...]                             # (dim,nt)*(1,nt)*(dim,1)
    o_ref[...] = y.astype(o_ref.dtype)


def _round_down_to_lane(v):
    return max(_LANE, (v // _LANE) * _LANE)


def _pick_n_tile(n, dim, itemsize, batch):
    """Byte-aware lane-tile picker: nt is a multiple of 128 sized from VMEM."""
    # Cap from the per-block byte target and the 4-buffer pipeline budget.
    cap = min(_MAX_BLOCK_BYTES // (dim * itemsize),
              _PIPELINE_VMEM_BUDGET // (4 * dim * itemsize))
    cap = _round_down_to_lane(max(cap, _LANE))
    # No point in a tile longer than n rounded up to a lane multiple.
    n_ceil = pl.cdiv(n, _LANE) * _LANE
    nt = _round_down_to_lane(min(cap, n_ceil))
    # Shrink until there are enough grid steps for pipelining / dual-TC.
    while nt > _LANE and batch * pl.cdiv(n, nt) < _MIN_GRID_STEPS:
        nt = _round_down_to_lane(nt // 2)
    return nt


def rmsnorm(x, g, *, eps=1e-12):
    """x: (b, dim, n) in the module's native NCL layout.  g: (dim,) or (1, dim, 1)."""
    b, dim, n = x.shape
    itemsize = jnp.dtype(x.dtype).itemsize

    nt = _pick_n_tile(n, dim, itemsize, b)
    n_tiles = pl.cdiv(n, nt)          # ragged last block is masked by Pallas

    # Hoist the gain scaling out of the kernel (done once, not per tile).
    g_scaled = (jnp.asarray(g, jnp.float32).reshape(dim, 1)
                * jnp.float32(math.sqrt(dim)))                 # (dim, 1)

    # 2 in + 2 out double-buffered blocks, plus slack for g / internal scratch.
    block_bytes = dim * nt * itemsize
    vmem_limit = int(max(16 << 20, min(32 << 20, 4 * block_bytes + (4 << 20))))

    kernel = functools.partial(_rmsnorm_kernel, eps=float(eps))

    return pl.pallas_call(
        kernel,
        out_shape=jax.ShapeDtypeStruct((b, dim, n), x.dtype),
        grid=(b, n_tiles),
        in_specs=[
            pl.BlockSpec((pl.Squeezed(), dim, nt), lambda i, j: (i, 0, j)),
            pl.BlockSpec((dim, 1), lambda i, j: (0, 0)),
        ],
        out_specs=pl.BlockSpec((pl.Squeezed(), dim, nt), lambda i, j: (i, 0, j)),
        compiler_params=pltpu.CompilerParams(
            dimension_semantics=("parallel", "parallel"),
            vmem_limit_bytes=vmem_limit),
    )(x, g_scaled)


def rmsnorm_ref(x, g, *, eps=1e-12):
    """Pure-JAX reference mirroring the PyTorch forward exactly."""
    b, dim, n = x.shape
    xf = x.astype(jnp.float32)
    norm = jnp.sqrt(jnp.sum(xf * xf, axis=1, keepdims=True))
    y = xf / jnp.maximum(norm, eps)
    return (y * jnp.asarray(g, jnp.float32).reshape(1, dim, 1)
            * jnp.float32(math.sqrt(dim))).astype(x.dtype)


if __name__ == "__main__":
    # Small, deterministic synthetic config in the module's (b, dim, n) layout.
    batch, dim, n = 2, 64, 256

    key = jax.random.PRNGKey(0)
    k0, k1 = jax.random.split(key)

    x = jax.random.normal(k0, (batch, dim, n), dtype=jnp.float32)
    # Torch init is ones; perturb it so the gain broadcast is actually exercised.
    g = 1.0 + 0.1 * jax.random.normal(k1, (1, dim, 1), dtype=jnp.float32)

    out = jax.block_until_ready(rmsnorm(x, g))
    ref = rmsnorm_ref(x, g)
    assert out.shape == (batch, dim, n)
    err = float(jnp.max(jnp.abs(out - ref)))
    assert jnp.allclose(out, ref, atol=2e-5, rtol=2e-5), err

    # Ragged-n path: exercises cdiv tiling + masked last lane block.
    n2 = 200
    x2 = jax.random.normal(jax.random.PRNGKey(1), (1, dim, n2), dtype=jnp.float32)
    out2 = jax.block_until_ready(rmsnorm(x2, g))
    ref2 = rmsnorm_ref(x2, g)
    err2 = float(jnp.max(jnp.abs(out2 - ref2)))
    assert jnp.allclose(out2, ref2, atol=2e-5, rtol=2e-5), err2

    print("KERNEL_OK")
</pallas_src>

<mosaic_0001>
module attributes {stable_mosaic.version = 11 : i64} {
  func.func @_rmsnorm_kernel(%arg0: i32, %arg1: i32, %arg2: memref<1x64x128xf32, #tpu.memory_space<vmem>>, %arg3: memref<64x1xf32, #tpu.memory_space<vmem>>, %arg4: memref<1x64x128xf32, #tpu.memory_space<vmem>>) attributes {dimension_semantics = [#tpu.dimension_semantics<parallel>, #tpu.dimension_semantics<parallel>], iteration_bounds = array<i64: 2, 2>, scalar_prefetch = 0 : i64, scratch_operands = 0 : i64, tpu.core_type = #tpu.core_type<tc>, window_params = [{transform_indices = @transform_0, window_bounds = array<i64: 1, 64, 128>}, {pipeline_mode = #tpu.pipeline_mode<synchronous>, transform_indices = @transform_1, window_bounds = array<i64: 64, 1>}, {transform_indices = @transform_2, window_bounds = array<i64: 1, 64, 128>}]} {
    %c0 = arith.constant 0 : index
    %c0_0 = arith.constant 0 : index
    %c0_1 = arith.constant 0 : index
    %0 = vector.load %arg2[%c0, %c0_0, %c0_1] : memref<1x64x128xf32, #tpu.memory_space<vmem>>, vector<1x64x128xf32>
    %1 = vector.shape_cast %0 : vector<1x64x128xf32> to vector<64x128xf32>
    %2 = arith.mulf %1, %1 : vector<64x128xf32>
    %cst = arith.constant dense<0.000000e+00> : vector<128xf32>
    %3 = vector.multi_reduction <add>, %2, %cst [0] : vector<64x128xf32> to vector<128xf32>
    %4 = vector.shape_cast %3 : vector<128xf32> to vector<1x128xf32>
    %cst_2 = arith.constant 1.000000e-24 : f32
    %5 = vector.broadcast %cst_2 : f32 to vector<1x128xf32>
    %6 = arith.maximumf %4, %5 : vector<1x128xf32>
    %7 = math.rsqrt %6 : vector<1x128xf32>
    %8 = vector.broadcast %7 : vector<1x128xf32> to vector<64x128xf32>
    %9 = arith.mulf %1, %8 : vector<64x128xf32>
    %c0_3 = arith.constant 0 : index
    %c0_4 = arith.constant 0 : index
    %10 = vector.load %arg3[%c0_3, %c0_4] : memref<64x1xf32, #tpu.memory_space<vmem>>, vector<64x1xf32>
    %11 = vector.broadcast %10 : vector<64x1xf32> to vector<64x128xf32>
    %12 = arith.mulf %9, %11 : vector<64x128xf32>
    %c0_5 = arith.constant 0 : index
    %c0_6 = arith.constant 0 : index
    %c0_7 = arith.constant 0 : index
    %13 = vector.load %arg4[%c0_5, %c0_6, %c0_7] : memref<1x64x128xf32, #tpu.memory_space<vmem>>, vector<1x64x128xf32>
    %14 = vector.shape_cast %13 : vector<1x64x128xf32> to vector<64x128xf32>
    %15 = vector.shape_cast %12 : vector<64x128xf32> to vector<1x64x128xf32>
    tpu.vector_store %arg4[%c0_5, %c0_6, %c0_7], %15 {strides = array<i32>} : memref<1x64x128xf32, #tpu.memory_space<vmem>>, vector<1x64x128xf32>,
    return
  }
  func.func @transform_0(%arg0: i32, %arg1: i32) -> (i32, i32, i32) {
    %c0_i32 = arith.constant 0 : i32
    %c0_i32_0 = arith.constant 0 : i32
    return %arg0, %c0_i32, %arg1 : i32, i32, i32
  }
  func.func @transform_1(%arg0: i32, %arg1: i32) -> (i32, i32) {
    %c0_i32 = arith.constant 0 : i32
    %c0_i32_0 = arith.constant 0 : i32
    %c0_i32_1 = arith.constant 0 : i32
    return %c0_i32, %c0_i32_0 : i32, i32
  }
  func.func @transform_2(%arg0: i32, %arg1: i32) -> (i32, i32, i32) {
    %c0_i32 = arith.constant 0 : i32
    %c0_i32_0 = arith.constant 0 : i32
    return %arg0, %c0_i32, %arg1 : i32, i32, i32
  }
}

</mosaic_0001>

<llo_original>
// kernel: tpu_custom_call.1
$region0: #{tpu_custom_call.1}
  #allocation0 [shape = 'u32[]', space=smem, size = 0x4, offset = 0x4, fixed_abs, tag = 'smem constant byte address 0x4 - core index']
  #allocation1 [shape = 'u32[144,128]{1,0:T(1,128)}', space=vmem, size = 0x12000, scoped, tag = 'internal scratch']
  %s0 = inlined_call_operand.hbm [shape: f32[2,64,256], index: 0, kind: input, shape index: {}]
  %s1 = inlined_call_operand.vmem [shape: f32[64,1], index: 1, kind: input, shape index: {}]
  %s2 = inlined_call_operand.hbm [shape: f32[2,64,256], index: 2, kind: output, shape index: {}]
  %s3 = sld [smem:[#allocation0]]
  $region45: #{tpu_custom_call.1} parent=0
    _
  %s5 = ssub.s32 1, %s3
  %s6 = scalar_select 0, %s5, %s3
  $region1: #{tpu_custom_call.1} parent=0
    #allocation2 [shape = 'u8[65536]{0}', space=vmem, size = 0x10000, scoped, tag = 'input window, operand 0']
    #allocation3 [shape = 's32[2]{0}', space=sflag, size = 0x8, scoped, tag = 'scoped memory for tpu_custom_call.1']
    #allocation4 [shape = 's32[2]{0}', space=sflag, size = 0x8, scoped, tag = 'scoped memory for tpu_custom_call.1']
    #allocation5 [shape = 'u8[65536]{0}', space=vmem, size = 0x10000, scoped, tag = 'output window, operand 0']
    %7 = vsyncpa [#allocation3], 0
    %s8 = scalar_lea.sflag [#allocation3], 1
    %9 = vsyncpa %s8, 0
    %10 = vsyncpa [#allocation4], 0
    %s11 = scalar_lea.sflag [#allocation4], 1
    %12 = vsyncpa %s11, 0
    loop: start=0, step=1, limit=6
    $region2: #{tpu_custom_call.1} parent=1 // loop_pre_header
      _
    $region3: #{tpu_custom_call.1} parent=1 // loop_header
      %s14 = sphi 0, %s18
      %p15 = scmp.ge.s32.totalorder %s14, 6
      %s21 = sphi 0, %s33
      %s22 = sphi 0, %s29
      %s23 = sphi 0, %s21
      %s24 = sphi 0, %s22
      %s25 = sphi 0, %s23
      %s26 = sphi 0, %s24
      %s38 = sphi 0, %s40
      %s41 = sphi 0, %s38
      %s42 = sphi 0, %s41
      %s58 = sphi 0, %s42
      %s62 = sphi 0, %s62
      %s64 = sphi 0, %s62
      %s65 = sphi 0, %s64
      %s79 = sphi 0, %s65
      %s87 = sphi 0, %s89
      %s90 = sphi 0, %s87
      %s91 = sphi 0, %s90
      %s107 = sphi 0, %s91
    $region4: #{tpu_custom_call.1} parent=1 // loop_header_branch
      %17 = sbr.rel (%p15) target = $region8
    $region5: #{tpu_custom_call.1} parent=1 // loop_body
      %s19 = ssub.s32 %s14, 1
      %s20 = ssub.s32 %s14, 2
      %s27 = sadd.s32 1, %s22
      %p28 = scmp.ge.s32.totalorder %s27, 2
      %s29 = scalar_select %p28, 0, %s27
      %s30 = sadd.s32 1, %s21
      %s31 = scalar_select %p28, %s30, %s21
      %p32 = scmp.ge.s32.totalorder %s31, 2
      %s33 = scalar_select %p32, 0, %s31
      %s34 = ssub.s32 %s21, %s33
      %s35 = ssub.s32 %s22, %s29
      %s36 = sor.u32 %s34, %s35
      %p37 = scmp.eq.s32.totalorder %s36, 0
      %s39 = sadd.s32 %s38, 1
      %s40 = scalar_select %p37, %s38, %s39
      %p43 = pneg %p37
      %p44 = scmp.eq.s32.totalorder %s14, 3
      %p45 = por %p43, %p44
      %p46 = scmp.ne.s32.totalorder %s38, %s41
      %p47 = scmp.eq.s32.totalorder %s14, 0
      %p48 = por %p46, %p47
      %p49 = scmp.ne.s32.totalorder %s38, %s41
      %p50 = scmp.eq.s32.totalorder %s19, 3
      %p51 = por %p49, %p50
      %p52 = scmp.ne.s32.totalorder %s41, %s42
      %p53 = scmp.eq.s32.totalorder %s19, 0
      %p54 = por %p52, %p53
      %p55 = scmp.ne.s32.totalorder %s41, %s42
      %p56 = scmp.eq.s32.totalorder %s20, 3
      %p57 = por %p55, %p56
      %p59 = scmp.ne.s32.totalorder %s42, %s58
      %p60 = scmp.eq.s32.totalorder %s20, 0
      %p61 = por %p59, %p60
      %s63 = sadd.s32 %s62, 1
      %p66 = scmp.eq.s32.totalorder %s14, 3
      %p67 = scmp.ne.s32.totalorder %s62, %s64
      %p68 = scmp.eq.s32.totalorder %s14, 0
      %p69 = por %p67, %p68
      %p70 = scmp.ne.s32.totalorder %s62, %s64
      %p71 = scmp.eq.s32.totalorder %s19, 3
      %p72 = por %p70, %p71
      %p73 = scmp.ne.s32.totalorder %s64, %s65
      %p74 = scmp.eq.s32.totalorder %s19, 0
      %p75 = por %p73, %p74
      %p76 = scmp.ne.s32.totalorder %s64, %s65
      %p77 = scmp.eq.s32.totalorder %s20, 3
      %p78 = por %p76, %p77
      %p80 = scmp.ne.s32.totalorder %s65, %s79
      %p81 = scmp.eq.s32.totalorder %s20, 0
      %p82 = por %p80, %p81
      %s83 = ssub.s32 %s21, %s33
      %s84 = ssub.s32 %s22, %s29
      %s85 = sor.u32 %s83, %s84
      %p86 = scmp.eq.s32.totalorder %s85, 0
      %s88 = sadd.s32 %s87, 1
      %s89 = scalar_select %p86, %s87, %s88
      %p92 = pneg %p86
      %p93 = scmp.eq.s32.totalorder %s14, 3
      %p94 = por %p92, %p93
      %p95 = scmp.ne.s32.totalorder %s87, %s90
      %p96 = scmp.eq.s32.totalorder %s14, 0
      %p97 = por %p95, %p96
      %p98 = scmp.ne.s32.totalorder %s87, %s90
      %p99 = scmp.eq.s32.totalorder %s19, 3
      %p100 = por %p98, %p99
      %p101 = scmp.ne.s32.totalorder %s90, %s91
      %p102 = scmp.eq.s32.totalorder %s19, 0
      %p103 = por %p101, %p102
      %p104 = scmp.ne.s32.totalorder %s90, %s91
      %p105 = scmp.eq.s32.totalorder %s20, 3
      %p106 = por %p104, %p105
      %p108 = scmp.ne.s32.totalorder %s91, %s107
      %p109 = scmp.eq.s32.totalorder %s20, 0
      %p110 = por %p108, %p109
      %p111 = scmp.le.s32.totalorder 1, %s14
      %p112 = scmp.lt.s32.totalorder %s14, 5
      %p113 = pnand %p111, %p112
      %p114 = pneg %p113
      // Predicated region
      $region9: #{tpu_custom_call.1} parent=5 // pred_check
        _
      $region10: #{tpu_custom_call.1} parent=5 // pred_check_branch
        %116 = sbr.rel (%p113) target = $region12
      $region11: #{tpu_custom_call.1} parent=5 // pred_region
        %s117 = ssub.s32 %s14, 1
        // Predicated region
        $region13: #{tpu_custom_call.1} parent=11 // pred_check
          %p118 = pneg %p75
        $region14: #{tpu_custom_call.1} parent=11 // pred_check_branch
          %120 = sbr.rel (%p118) target = $region16
        $region15: #{tpu_custom_call.1} parent=11 // pred_region
          _
        $region16: #{tpu_custom_call.1} parent=11 // pred_fallthru
          _
      $region12: #{tpu_custom_call.1} parent=5 // pred_fallthru
        _
      %p121 = scmp.lt.s32.totalorder %s14, 4
      // Predicated region
      $region17: #{tpu_custom_call.1} parent=5 // pred_check
        %p122 = pneg %p121
      $region18: #{tpu_custom_call.1} parent=5 // pred_check_branch
        %124 = sbr.rel (%p122) target = $region20
      $region19: #{tpu_custom_call.1} parent=5 // pred_region
        // Predicated region
        $region21: #{tpu_custom_call.1} parent=19 // pred_check
          %p125 = pneg %p48
        $region22: #{tpu_custom_call.1} parent=19 // pred_check_branch
          %127 = sbr.rel (%p125) target = $region24
        $region23: #{tpu_custom_call.1} parent=19 // pred_region
          %s128 = sand.u32 %s38, 1
          %s129 = scalar_lea.sflag [#allocation3], %s128
          %s130 = sand.u32 %s38, 1
          %s131 = smul.addr %s130, 64
          %s132 = scalar_lea.vmem [#allocation2], %s131
          %s134 = ssub.s32 1024, 1024
          %135 = vsyncadd %s129, %s134
          %s136 = smul.addr %s21, 16
          %s137 = sadd.s32 %s22, %s136
          %s138 = smul.addr %s137, 128
          %s139 = scalar_lea.hbm %s0, %s138
          %s140 = sshll.u32 %s132, 4
          %s141 = int_to_ptr.vmem [resolvable:$true] %s140
          %146 = dma.hbm_to_vmem [thread:$0]  %s139, 1024, %s141, %s129, 256, 128, 8
        $region24: #{tpu_custom_call.1} parent=19 // pred_fallthru
          _
      $region20: #{tpu_custom_call.1} parent=5 // pred_fallthru
        _
      %p147 = scmp.le.s32.totalorder 1, %s14
      %p148 = scmp.lt.s32.totalorder %s14, 5
      %p149 = pnand %p147, %p148
      %p150 = pneg %p149
      // Predicated region
      $region25: #{tpu_custom_call.1} parent=5 // pred_check
        _
      $region26: #{tpu_custom_call.1} parent=5 // pred_check_branch
        %152 = sbr.rel (%p149) target = $region28
      $region27: #{tpu_custom_call.1} parent=5 // pred_region
        %s153 = ssub.s32 %s14, 1
        %s154 = sand.u32 %s41, 1
        %s155 = scalar_lea.sflag [#allocation3], %s154
        %s156 = sand.u32 %s41, 1
        %s157 = smul.addr %s156, 64
        %s158 = scalar_lea.vmem [#allocation2], %s157
        // Predicated region
        $region29: #{tpu_custom_call.1} parent=27 // pred_check
          %p159 = pneg %p54
        $region30: #{tpu_custom_call.1} parent=27 // pred_check_branch
          %161 = sbr.rel (%p159) target = $region32
        $region31: #{tpu_custom_call.1} parent=27 // pred_region
          %162 = dma.done %s155, 1024
        $region32: #{tpu_custom_call.1} parent=27 // pred_fallthru
          _
        %s163 = sand.u32 %s41, 1
        %s164 = scalar_lea.sflag [#allocation3], %s163
        %s165 = sand.u32 %s41, 1
        %s166 = smul.addr %s165, 64
        %s167 = scalar_lea.vmem [#allocation2], %s166
        %p168 = pneg %p54
        %p169 = pneg %p51
        %p170 = pneg %p75
        %p171 = pneg %p72
        %p172 = pneg %p103
        %p173 = pneg %p100
        %s174 = sand.u32 %s90, 1
        %s175 = scalar_lea.sflag [#allocation4], %s174
        %s176 = sand.u32 %s90, 1
        %s177 = smul.addr %s176, 64
        %s178 = scalar_lea.vmem [#allocation5], %s177
        %v179 = vld [vmem:[%s158] sm:$0xff]
        %v180 = vld [vmem:[%s158 + $0x8] sm:$0xff]
        %v181 = vld [vmem:[%s158 + $0x10] sm:$0xff]
        %v182 = vld [vmem:[%s158 + $0x18] sm:$0xff]
        %v183 = vld [vmem:[%s158 + $0x20] sm:$0xff]
        %v184 = vld [vmem:[%s158 + $0x28] sm:$0xff]
        %v185 = vld [vmem:[%s158 + $0x30] sm:$0xff]
        %v186 = vld [vmem:[%s158 + $0x38] sm:$0xff]
        %v187 = vmul.f32 %v179, %v179
        %v188 = vmul.f32 %v180, %v180
        %v189 = vmul.f32 %v181, %v181
        %v190 = vmul.f32 %v182, %v182
        %v191 = vmul.f32 %v183, %v183
        %v192 = vmul.f32 %v184, %v184
        %v193 = vmul.f32 %v185, %v185
        %v194 = vmul.f32 %v186, %v186
        %v195 = vadd.f32 %v187, %v188
        %v196 = vadd.f32 %v195, %v189
        %v197 = vadd.f32 %v196, %v190
        %v198 = vadd.f32 %v197, %v191
        %v199 = vadd.f32 %v198, %v192
        %v200 = vadd.f32 %v199, %v193
        %v201 = vadd.f32 %v200, %v194
        %v202 = vrot.slane %v201, 4
        %v203 = vadd.f32 %v201, %v202
        %v204 = vrot.slane %v203, 2
        %v205 = vadd.f32 %v203, %v204
        %v206 = vrot.slane %v205, 1
        %v207 = vadd.f32 %v205, %v206
        %v208 = vmax.f32 %v207, 1e-24
        %v209 = vrsqrt.pop %v208
        %v210 = vmul.f32 %v179, %v209
        %v211 = vmul.f32 %v180, %v209
        %v212 = vmul.f32 %v181, %v209
        %v213 = vmul.f32 %v182, %v209
        %v214 = vmul.f32 %v183, %v209
        %v215 = vmul.f32 %v184, %v209
        %v216 = vmul.f32 %v185, %v209
        %v217 = vmul.f32 %v186, %v209
        %v218 = vld [vmem:[%s1] sm:$0xff]
        %v219 = vld [vmem:[%s1 + $0x8] sm:$0xff]
        %v220 = vld [vmem:[%s1 + $0x10] sm:$0xff]
        %v221 = vld [vmem:[%s1 + $0x18] sm:$0xff]
        %v222 = vld [vmem:[%s1 + $0x20] sm:$0xff]
        %v223 = vld [vmem:[%s1 + $0x28] sm:$0xff]
        %v224 = vld [vmem:[%s1 + $0x30] sm:$0xff]
        %v225 = vld [vmem:[%s1 + $0x38] sm:$0xff]
        %227 = vset.pattern.permute.xlu0 0
        %228 = vperm.xlu0 %227, %v218
        %v229 = vpop.permute.xlu0 %228
        %232 = vset.pattern.permute.xlu0 0
        %233 = vperm.xlu0 %232, %v219
        %v234 = vpop.permute.xlu0 %233
        %237 = vset.pattern.permute.xlu0 0
        %238 = vperm.xlu0 %237, %v220
        %v239 = vpop.permute.xlu0 %238
        %242 = vset.pattern.permute.xlu0 0
        %243 = vperm.xlu0 %242, %v221
        %v244 = vpop.permute.xlu0 %243
        %247 = vset.pattern.permute.xlu0 0
        %248 = vperm.xlu0 %247, %v222
        %v249 = vpop.permute.xlu0 %248
        %252 = vset.pattern.permute.xlu0 0
        %253 = vperm.xlu0 %252, %v223
        %v254 = vpop.permute.xlu0 %253
        %257 = vset.pattern.permute.xlu0 0
        %258 = vperm.xlu0 %257, %v224
        %v259 = vpop.permute.xlu0 %258
        %262 = vset.pattern.permute.xlu0 0
        %263 = vperm.xlu0 %262, %v225
        %v264 = vpop.permute.xlu0 %263
        %v266 = vmul.f32 %v210, %v229
        %v267 = vmul.f32 %v211, %v234
        %v268 = vmul.f32 %v212, %v239
        %v269 = vmul.f32 %v213, %v244
        %v270 = vmul.f32 %v214, %v249
        %v271 = vmul.f32 %v215, %v254
        %v272 = vmul.f32 %v216, %v259
        %v273 = vmul.f32 %v217, %v264
        %274 = vst [vmem:[%s178] sm:$0xff] %v266
        %275 = vst [vmem:[%s178 + $0x8] sm:$0xff] %v267
        %276 = vst [vmem:[%s178 + $0x10] sm:$0xff] %v268
        %277 = vst [vmem:[%s178 + $0x18] sm:$0xff] %v269
        %278 = vst [vmem:[%s178 + $0x20] sm:$0xff] %v270
        %279 = vst [vmem:[%s178 + $0x28] sm:$0xff] %v271
        %280 = vst [vmem:[%s178 + $0x30] sm:$0xff] %v272
        %281 = vst [vmem:[%s178 + $0x38] sm:$0xff] %v273
        %s282 = sand.u32 %s90, 1
        %s283 = scalar_lea.sflag [#allocation4], %s282
        %s284 = sand.u32 %s90, 1
        %s285 = smul.addr %s284, 64
        %s286 = scalar_lea.vmem [#allocation5], %s285
        // Predicated region
        $region33: #{tpu_custom_call.1} parent=27 // pred_check
          %p287 = pneg %p100
        $region34: #{tpu_custom_call.1} parent=27 // pred_check_branch
          %289 = sbr.rel (%p287) target = $region36
        $region35: #{tpu_custom_call.1} parent=27 // pred_region
          %s291 = ssub.s32 1024, 1024
          %292 = vsyncadd %s283, %s291
          %s293 = smul.addr %s23, 16
          %s294 = sadd.s32 %s24, %s293
          %s295 = smul.addr %s294, 128
          %s296 = scalar_lea.hbm %s2, %s295
          %s297 = sshll.u32 %s286, 4
          %s298 = int_to_ptr.vmem [resolvable:$true] %s297
          %303 = dma.vmem_to_hbm [thread:$0]  %s298, 1024, %s296, %s283, 128, 256, 8
        $region36: #{tpu_custom_call.1} parent=27 // pred_fallthru
          _
      $region28: #{tpu_custom_call.1} parent=5 // pred_fallthru
        _
      %p304 = scmp.le.s32.totalorder 2, %s14
      // Predicated region
      $region37: #{tpu_custom_call.1} parent=5 // pred_check
        %p305 = pneg %p304
      $region38: #{tpu_custom_call.1} parent=5 // pred_check_branch
        %307 = sbr.rel (%p305) target = $region40
      $region39: #{tpu_custom_call.1} parent=5 // pred_region
        %s308 = ssub.s32 %s14, 2
        // Predicated region
        $region41: #{tpu_custom_call.1} parent=39 // pred_check
          %p309 = pneg %p106
        $region42: #{tpu_custom_call.1} parent=39 // pred_check_branch
          %311 = sbr.rel (%p309) target = $region44
        $region43: #{tpu_custom_call.1} parent=39 // pred_region
          %s312 = sand.u32 %s91, 1
          %s313 = scalar_lea.sflag [#allocation4], %s312
          %s314 = sand.u32 %s91, 1
          %s315 = smul.addr %s314, 64
          %s316 = scalar_lea.vmem [#allocation5], %s315
          %317 = dma.done %s313, 1024
        $region44: #{tpu_custom_call.1} parent=39 // pred_fallthru
          _
      $region40: #{tpu_custom_call.1} parent=5 // pred_fallthru
        _
    $region6: #{tpu_custom_call.1} parent=1 // loop_footer
      %s18 = sadd.s32 1, %s14
    $region7: #{tpu_custom_call.1} parent=1 // loop_footer_branch
      %13 = sbr.rel target = $region3
    $region8: #{tpu_custom_call.1} parent=1 // loop_exit
      _
    %318 = vsyncpa [#allocation3], 1
    %s319 = scalar_lea.sflag [#allocation3], 1
    %320 = vsyncpa %s319, 1
    %321 = vsyncpa [#allocation4], 1
    %s322 = scalar_lea.sflag [#allocation4], 1
    %323 = vsyncpa %s322, 1

</llo_original>
